<compile_context>
chip_gen: v7x
topology: tpu7x:2x2x1
jax: 0.10.0
libtpu: 0.0.40
codegen_flags: <defaults>
</compile_context>

<pallas_src>
import functools

import jax
import jax.numpy as jnp
from jax import lax
from jax.experimental import pallas as pl
from jax.experimental.pallas import tpu as pltpu


def _round_up(x, m):
    return (x + m - 1) // m * m


def _pick_block_h(h):
    """Output rows per tile; prefer tiles that give >= 2 H-tiles, then least
    padding waste, then the largest tile."""
    best = None
    for th in (32, 16, 8):
        hp = _round_up(h, th)
        key = (0 if hp // th >= 2 else 1, hp - h, -th)
        if best is None or key < best[0]:
            best = (key, th)
    return best[1]


def conv_bn_silu_kernel(x_ref, w_ref, scale_ref, bias_ref, o_ref, *acc,
                        wp, taps):
    """One (batch, h-tile, cout-tile) grid step.

    x_ref:     (Ltile, depth)  pre-shifted image slab (bf16),
                               Ltile = L + (taps-1)*wp, depth = shifts*Cin
    w_ref:     (taps, depth, TCO) flattened weight slice (bf16)
    scale_ref: (1, TCO)        folded BN scale, f32
    bias_ref:  (1, TCO)        folded BN bias,  f32
    o_ref:     (L, TCO)        output tile (bf16), L = TH*Wp
    acc:       optional (L, TCO) f32 VMEM scratch (present iff taps > 1)
    """
    L = o_ref.shape[0]
    if taps == 1:
        # full im2col: one MXU matmul, no accumulator round-trips.
        y = jnp.dot(x_ref[...], w_ref[0], preferred_element_type=jnp.float32)
    else:
        acc_ref, = acc
        # window starts t*wp are static multiples of 8 (wp % 8 == 0).
        acc_ref[...] = jnp.dot(x_ref[pl.ds(0, L), :], w_ref[0],
                               preferred_element_type=jnp.float32)
        for t in range(1, taps):
            acc_ref[...] += jnp.dot(x_ref[pl.ds(t * wp, L), :], w_ref[t],
                                    preferred_element_type=jnp.float32)
        y = acc_ref[...]

    # fused BatchNorm (eval, folded) + SiLU, in f32.
    y = y * scale_ref[0] + bias_ref[0]
    o_ref[...] = (y * jax.nn.sigmoid(y)).astype(o_ref.dtype)


@functools.partial(jax.jit, static_argnames=("eps",))
def conv_bn_silu(x_nchw, weight_oihw, gamma, beta, running_mean, running_var,
                 eps=1e-5):
    """Forward of `Conv` (stride=1, dilation=1, groups=1, act=SiLU)."""
    N, Cin, H, W = x_nchw.shape
    Cout, Cin_w, K, K2 = weight_oihw.shape
    assert Cin_w == Cin and K == K2 and K % 2 == 1, \
        "only groups=1, square odd kernels supported"
    pad = K // 2                               # autopad for s=1, d=1, odd k

    TH = _pick_block_h(H)
    H_pad = _round_up(H, TH)
    NH = H_pad // TH
    Wp = _round_up(W + 2 * pad, 8)             # sublane-aligned padded width
    L = TH * Wp                                # flattened output rows per tile

    TCO = 256 if Cout >= 256 else 128          # 256 fills the v6e/v7x MXU
    CO_pad = _round_up(Cout, TCO)
    NCO = CO_pad // TCO

    # kw (and for small Cin also kh) taps folded into the contraction dim.
    if K == 1 or K * Cin < 128:
        shifts, taps = [kh * Wp + kw for kh in range(K) for kw in range(K)], 1
    else:
        shifts, taps = list(range(K)), K
    depth = len(shifts) * Cin
    Ltile = L + (taps - 1) * Wp                # image slab rows per tile

    # ---- layout glue (NCHW f32 -> pre-shifted, pre-tiled bf16) -------------
    # TODO(synk): in an end-to-end NHWC/bf16 model these transposes, casts and
    # the shift/tile pre-pass would live in the producer.
    x = jnp.transpose(x_nchw, (0, 2, 3, 1)).astype(jnp.bfloat16)
    xp = jnp.pad(x, ((0, 0), (pad, pad + H_pad - H), (pad, Wp - W - pad),
                     (0, 0)))
    Hp = H_pad + 2 * pad
    xf = xp.reshape(N, Hp * Wp, Cin)           # row-major -> free reshape
    xf = jnp.pad(xf, ((0, 0), (0, K - 1), (0, 0)))   # in-row kw-shift overhang
    rows = H_pad * Wp + (taps - 1) * Wp
    # stack shifted copies along channels: xk[:, q, s*Cin:(s+1)*Cin] = xf[:, q+shift]
    xk = jnp.concatenate([xf[:, s:s + rows, :] for s in shifts], axis=-1)
    if taps == 1:
        xt = xk.reshape(N, NH, L, depth)       # contiguous, no halo needed
    else:
        # pre-tile over output rows with a (taps-1)-row halo so each grid step
        # holds only a small slab in VMEM (size-independent, v7x safe).
        xt = jnp.stack([xk[:, h * L:h * L + Ltile, :] for h in range(NH)],
                       axis=1)                 # (N, NH, Ltile, depth)

    # OIHW -> (taps, depth, CO_pad), bf16.  taps*depth == K*K*Cin.
    w = jnp.transpose(weight_oihw, (2, 3, 1, 0))        # (K, K, Cin, Cout)
    w = jnp.pad(w, ((0, 0), (0, 0), (0, 0), (0, CO_pad - Cout)))
    w = w.reshape(taps, depth, CO_pad).astype(jnp.bfloat16)

    # fold BatchNorm (eval) into per-channel scale/bias, kept in f32.
    inv_std = (gamma / jnp.sqrt(running_var + eps)).astype(jnp.float32)
    scale = jnp.pad(inv_std, (0, CO_pad - Cout)).reshape(1, CO_pad)
    bias = jnp.pad((beta - running_mean * inv_std).astype(jnp.float32),
                   (0, CO_pad - Cout)).reshape(1, CO_pad)

    kernel = functools.partial(conv_bn_silu_kernel, wp=Wp, taps=taps)
    scratch = [pltpu.VMEM((L, TCO), jnp.float32)] if taps > 1 else []

    # VMEM budget from actual block sizes (double-buffered inputs/outputs).
    need = (2 * (Ltile * depth * 2 + taps * depth * TCO * 2 + L * TCO * 2)
            + (L * TCO * 4 if taps > 1 else 0) + 2 * 2 * TCO * 4)
    vmem_limit = int(min(100 << 20, max(32 << 20, 2 * need)))

    out_flat = pl.pallas_call(
        kernel,
        out_shape=jax.ShapeDtypeStruct((N, H_pad * Wp, CO_pad), jnp.bfloat16),
        grid=(N, NH, NCO),                     # co innermost: image slab DMA'd once
        in_specs=[
            # per-(n, h) image slab; block index constant across the inner co
            # axis so it stays resident while all Cout tiles are produced.
            pl.BlockSpec((None, None, Ltile, depth),
                         lambda n, h, co: (n, h, 0, 0)),
            # only the TCO-wide Cout slice of the flattened weights.
            pl.BlockSpec((taps, depth, TCO), lambda n, h, co: (0, 0, co)),
            pl.BlockSpec((1, TCO), lambda n, h, co: (0, co)),
            pl.BlockSpec((1, TCO), lambda n, h, co: (0, co)),
        ],
        # lane-dense (multiple-of-128-wide) bf16 output tile.
        out_specs=pl.BlockSpec((None, L, TCO), lambda n, h, co: (n, h, co)),
        scratch_shapes=scratch,
        compiler_params=pltpu.CompilerParams(
            dimension_semantics=("parallel", "parallel", "parallel"),
            vmem_limit_bytes=vmem_limit,
        ),
    )(xt, w, scale, bias)

    # drop W-halo/alignment columns, H padding and Cout padding; NHWC -> NCHW.
    out = out_flat.reshape(N, H_pad, Wp, CO_pad)[:, :H, :W, :Cout]
    return jnp.transpose(out, (0, 3, 1, 2)).astype(x_nchw.dtype)


if __name__ == "__main__":
    def run_case(name, N, C1, C2, H, W, K, key):
        kx, kw, kg, kb, km, kv = jax.random.split(key, 6)
        x = jax.random.normal(kx, (N, C1, H, W), dtype=jnp.float32)
        weight = jax.random.normal(kw, (C2, C1, K, K), dtype=jnp.float32) * 0.1
        gamma = 1.0 + 0.1 * jax.random.normal(kg, (C2,), dtype=jnp.float32)
        beta = 0.1 * jax.random.normal(kb, (C2,), dtype=jnp.float32)
        rmean = 0.05 * jax.random.normal(km, (C2,), dtype=jnp.float32)
        rvar = 1.0 + 0.1 * jax.random.uniform(kv, (C2,), dtype=jnp.float32)

        out = jax.block_until_ready(
            conv_bn_silu(x, weight, gamma, beta, rmean, rvar))
        assert out.shape == (N, C2, H, W), (name, out.shape)
        assert bool(jnp.all(jnp.isfinite(out))), name

        # f32 reference: conv -> BN(eval) -> SiLU.  Kernel uses bf16 MXU
        # operands and bf16 writeback, so compare with bf16 tolerances.
        conv = lax.conv_general_dilated(
            x, weight, window_strides=(1, 1), padding="SAME",
            dimension_numbers=("NCHW", "OIHW", "NCHW"))
        inv_std = gamma / jnp.sqrt(rvar + 1e-5)
        ref = conv * inv_std.reshape(1, C2, 1, 1) + (
            beta - rmean * inv_std).reshape(1, C2, 1, 1)
        ref = ref * jax.nn.sigmoid(ref)
        err = float(jnp.max(jnp.abs(out - ref)))
        assert bool(jnp.allclose(out, ref, atol=5e-2, rtol=5e-2)), (name, err)

    key = jax.random.PRNGKey(0)
    k1, k2, k3 = jax.random.split(key, 3)
    # small-Cin path: full im2col (taps=1, single matmul per tile)
    run_case("im2col", 2, 4, 8, 16, 16, 3, k1)
    # wide-Cin path: kw-fold (taps=K); also exercises H padding and NCO=2
    run_case("kwfold", 1, 48, 160, 12, 12, 3, k2)
    # 1x1 conv (the module's default k=1)
    run_case("1x1", 2, 32, 8, 16, 16, 1, k3)

    print("KERNEL_OK")
</pallas_src>

<mosaic_0001>
module attributes {stable_mosaic.version = 11 : i64} {
  func.func @conv_bn_silu_kernel(%arg0: i32, %arg1: i32, %arg2: i32, %arg3: memref<1x1x192x36xbf16, #tpu.memory_space<vmem>>, %arg4: memref<1x36x128xbf16, #tpu.memory_space<vmem>>, %arg5: memref<1x128xf32, #tpu.memory_space<vmem>>, %arg6: memref<1x128xf32, #tpu.memory_space<vmem>>, %arg7: memref<1x192x128xbf16, #tpu.memory_space<vmem>>) attributes {dimension_semantics = [#tpu.dimension_semantics<parallel>, #tpu.dimension_semantics<parallel>, #tpu.dimension_semantics<parallel>], iteration_bounds = array<i64: 2, 2, 1>, scalar_prefetch = 0 : i64, scratch_operands = 0 : i64, tpu.core_type = #tpu.core_type<tc>, window_params = [{transform_indices = @transform_0, window_bounds = array<i64: 1, 1, 192, 36>}, {transform_indices = @transform_1, window_bounds = array<i64: 1, 36, 128>}, {transform_indices = @transform_2, window_bounds = array<i64: 1, 128>}, {transform_indices = @transform_3, window_bounds = array<i64: 1, 128>}, {transform_indices = @transform_4, window_bounds = array<i64: 1, 192, 128>}]} {
    %c0 = arith.constant 0 : index
    %c0_0 = arith.constant 0 : index
    %c0_1 = arith.constant 0 : index
    %c0_2 = arith.constant 0 : index
    %0 = vector.load %arg3[%c0, %c0_0, %c0_1, %c0_2] : memref<1x1x192x36xbf16, #tpu.memory_space<vmem>>, vector<1x1x192x36xbf16>
    %1 = vector.shape_cast %0 : vector<1x1x192x36xbf16> to vector<192x36xbf16>
    %c0_3 = arith.constant 0 : index
    %c0_4 = arith.constant 0 : index
    %c0_5 = arith.constant 0 : index
    %2 = vector.load %arg4[%c0_3, %c0_4, %c0_5] : memref<1x36x128xbf16, #tpu.memory_space<vmem>>, vector<1x36x128xbf16>
    %3 = vector.shape_cast %2 : vector<1x36x128xbf16> to vector<36x128xbf16>
    %cst = arith.constant dense<0.000000e+00> : vector<192x128xf32>
    %4 = tpu.matmul %1, %3, %cst {dimension_numbers = #tpu.dot_dimension_numbers<[1], [0], [0], [1], [0, 0, 1, 1], [], []>} : vector<192x36xbf16>, vector<36x128xbf16>, vector<192x128xf32> -> vector<192x128xf32>
    %c0_6 = arith.constant 0 : index
    %c0_7 = arith.constant 0 : index
    %5 = vector.load %arg5[%c0_6, %c0_7] : memref<1x128xf32, #tpu.memory_space<vmem>>, vector<1x128xf32>
    %6 = vector.shape_cast %5 : vector<1x128xf32> to vector<128xf32>
    %7 = vector.shape_cast %6 : vector<128xf32> to vector<1x128xf32>
    %8 = vector.broadcast %7 : vector<1x128xf32> to vector<192x128xf32>
    %9 = arith.mulf %4, %8 : vector<192x128xf32>
    %c0_8 = arith.constant 0 : index
    %c0_9 = arith.constant 0 : index
    %10 = vector.load %arg6[%c0_8, %c0_9] : memref<1x128xf32, #tpu.memory_space<vmem>>, vector<1x128xf32>
    %11 = vector.shape_cast %10 : vector<1x128xf32> to vector<128xf32>
    %12 = vector.shape_cast %11 : vector<128xf32> to vector<1x128xf32>
    %13 = vector.broadcast %12 : vector<1x128xf32> to vector<192x128xf32>
    %14 = arith.addf %9, %13 : vector<192x128xf32>
    %15 = arith.negf %14 : vector<192x128xf32>
    %16 = math.exp %15 : vector<192x128xf32>
    %cst_10 = arith.constant 1.000000e+00 : f32
    %17 = vector.broadcast %cst_10 : f32 to vector<192x128xf32>
    %18 = arith.addf %17, %16 : vector<192x128xf32>
    %19 = arith.divf %17, %18 : vector<192x128xf32>
    %20 = arith.mulf %14, %19 : vector<192x128xf32>
    %21 = arith.truncf %20 : vector<192x128xf32> to vector<192x128xbf16>
    %c0_11 = arith.constant 0 : index
    %c0_12 = arith.constant 0 : index
    %c0_13 = arith.constant 0 : index
    %22 = vector.load %arg7[%c0_11, %c0_12, %c0_13] : memref<1x192x128xbf16, #tpu.memory_space<vmem>>, vector<1x192x128xbf16>
    %23 = vector.shape_cast %22 : vector<1x192x128xbf16> to vector<192x128xbf16>
    %24 = vector.shape_cast %21 : vector<192x128xbf16> to vector<1x192x128xbf16>
    tpu.vector_store %arg7[%c0_11, %c0_12, %c0_13], %24 {strides = array<i32>} : memref<1x192x128xbf16, #tpu.memory_space<vmem>>, vector<1x192x128xbf16>,
    return
  }
  func.func @transform_0(%arg0: i32, %arg1: i32, %arg2: i32) -> (i32, i32, i32, i32) {
    %c0_i32 = arith.constant 0 : i32
    %c0_i32_0 = arith.constant 0 : i32
    %c0_i32_1 = arith.constant 0 : i32
    return %arg0, %arg1, %c0_i32, %c0_i32_0 : i32, i32, i32, i32
  }
  func.func @transform_1(%arg0: i32, %arg1: i32, %arg2: i32) -> (i32, i32, i32) {
    %c0_i32 = arith.constant 0 : i32
    %c0_i32_0 = arith.constant 0 : i32
    %c0_i32_1 = arith.constant 0 : i32
    return %c0_i32, %c0_i32_0, %arg2 : i32, i32, i32
  }
  func.func @transform_2(%arg0: i32, %arg1: i32, %arg2: i32) -> (i32, i32) {
    %c0_i32 = arith.constant 0 : i32
    %c0_i32_0 = arith.constant 0 : i32
    return %c0_i32, %arg2 : i32, i32
  }
  func.func @transform_3(%arg0: i32, %arg1: i32, %arg2: i32) -> (i32, i32) {
    %c0_i32 = arith.constant 0 : i32
    %c0_i32_0 = arith.constant 0 : i32
    return %c0_i32, %arg2 : i32, i32
  }
  func.func @transform_4(%arg0: i32, %arg1: i32, %arg2: i32) -> (i32, i32, i32) {
    %c0_i32 = arith.constant 0 : i32
    return %arg0, %arg1, %arg2 : i32, i32, i32
  }
}

</mosaic_0001>

<llo_original>
// kernel: conv_bn_silu.1
$region0: #{conv_bn_silu.1}
  #allocation0 [shape = 'u32[]', space=smem, size = 0x4, offset = 0x4, fixed_abs, tag = 'smem constant byte address 0x4 - core index']
  #allocation1 [shape = 'u32[144,128]{1,0:T(1,128)}', space=vmem, size = 0x12000, scoped, tag = 'internal scratch']
  %s0 = inlined_call_operand.vmem [shape: bf16[2,2,192,36], index: 0, kind: input, shape index: {}]
  %s1 = inlined_call_operand.vmem [shape: bf16[1,36,128], index: 1, kind: input, shape index: {}]
  %s2 = inlined_call_operand.vmem [shape: f32[1,128], index: 2, kind: input, shape index: {}]
  %s3 = inlined_call_operand.vmem [shape: f32[1,128], index: 3, kind: input, shape index: {}]
  %s4 = inlined_call_operand.vmem [shape: bf16[2,384,128], index: 4, kind: output, shape index: {}]
  %s5 = sld [smem:[#allocation0]]
  $region49: #{conv_bn_silu.1} parent=0
    _
  %s7 = ssub.s32 1, %s5
  %s8 = scalar_select 0, %s7, %s5
  loop: start=0, step=1, limit=6
  $region2: #{conv_bn_silu.1} parent=0 // loop_pre_header
    _
  $region3: #{conv_bn_silu.1} parent=0 // loop_header
    %s10 = sphi 0, %s14
    %p11 = scmp.ge.s32.totalorder %s10, 6
    %s17 = sphi 0, %s36
    %s18 = sphi 0, %s32
    %s19 = sphi 0, %s28
    %s20 = sphi 0, %s17
    %s21 = sphi 0, %s18
    %s22 = sphi 0, %s19
    %s23 = sphi 0, %s20
    %s24 = sphi 0, %s21
    %s25 = sphi 0, %s22
    %s41 = sphi 0, %s43
    %s44 = sphi 0, %s41
    %s45 = sphi 0, %s44
    %s61 = sphi 0, %s45
    %s67 = sphi 0, %s69
    %s70 = sphi 0, %s67
    %s71 = sphi 0, %s70
    %s87 = sphi 0, %s71
    %s93 = sphi 0, %s95
    %s96 = sphi 0, %s93
    %s97 = sphi 0, %s96
    %s113 = sphi 0, %s97
    %s119 = sphi 0, %s121
    %s122 = sphi 0, %s119
    %s123 = sphi 0, %s122
    %s139 = sphi 0, %s123
    %s149 = sphi 0, %s151
    %s152 = sphi 0, %s149
    %s153 = sphi 0, %s152
    %s169 = sphi 0, %s153
  $region4: #{conv_bn_silu.1} parent=0 // loop_header_branch
    %13 = sbr.rel (%p11) target = $region8
  $region5: #{conv_bn_silu.1} parent=0 // loop_body
    %s15 = ssub.s32 %s10, 1
    %s16 = ssub.s32 %s10, 2
    %s26 = sadd.s32 1, %s19
    %p27 = scmp.ge.s32.totalorder %s26, 1
    %s28 = scalar_select %p27, 0, %s26
    %s29 = sadd.s32 1, %s18
    %s30 = scalar_select %p27, %s29, %s18
    %p31 = scmp.ge.s32.totalorder %s30, 2
    %s32 = scalar_select %p31, 0, %s30
    %s33 = sadd.s32 1, %s17
    %s34 = scalar_select %p31, %s33, %s17
    %p35 = scmp.ge.s32.totalorder %s34, 2
    %s36 = scalar_select %p35, 0, %s34
    %s37 = ssub.s32 %s17, %s36
    %s38 = ssub.s32 %s18, %s32
    %s39 = sor.u32 %s37, %s38
    %p40 = scmp.eq.s32.totalorder %s39, 0
    %s42 = sadd.s32 %s41, 1
    %s43 = scalar_select %p40, %s41, %s42
    %p46 = pneg %p40
    %p47 = scmp.eq.s32.totalorder %s10, 3
    %p48 = por %p46, %p47
    %p49 = scmp.ne.s32.totalorder %s41, %s44
    %p50 = scmp.eq.s32.totalorder %s10, 0
    %p51 = por %p49, %p50
    %p52 = scmp.ne.s32.totalorder %s41, %s44
    %p53 = scmp.eq.s32.totalorder %s15, 3
    %p54 = por %p52, %p53
    %p55 = scmp.ne.s32.totalorder %s44, %s45
    %p56 = scmp.eq.s32.totalorder %s15, 0
    %p57 = por %p55, %p56
    %p58 = scmp.ne.s32.totalorder %s44, %s45
    %p59 = scmp.eq.s32.totalorder %s16, 3
    %p60 = por %p58, %p59
    %p62 = scmp.ne.s32.totalorder %s45, %s61
    %p63 = scmp.eq.s32.totalorder %s16, 0
    %p64 = por %p62, %p63
    %s65 = ssub.s32 %s19, %s28
    %p66 = scmp.eq.s32.totalorder %s65, 0
    %s68 = sadd.s32 %s67, 1
    %s69 = scalar_select %p66, %s67, %s68
    %p72 = pneg %p66
    %p73 = scmp.eq.s32.totalorder %s10, 3
    %p74 = por %p72, %p73
    %p75 = scmp.ne.s32.totalorder %s67, %s70
    %p76 = scmp.eq.s32.totalorder %s10, 0
    %p77 = por %p75, %p76
    %p78 = scmp.ne.s32.totalorder %s67, %s70
    %p79 = scmp.eq.s32.totalorder %s15, 3
    %p80 = por %p78, %p79
    %p81 = scmp.ne.s32.totalorder %s70, %s71
    %p82 = scmp.eq.s32.totalorder %s15, 0
    %p83 = por %p81, %p82
    %p84 = scmp.ne.s32.totalorder %s70, %s71
    %p85 = scmp.eq.s32.totalorder %s16, 3
    %p86 = por %p84, %p85
    %p88 = scmp.ne.s32.totalorder %s71, %s87
    %p89 = scmp.eq.s32.totalorder %s16, 0
    %p90 = por %p88, %p89
    %s91 = ssub.s32 %s19, %s28
    %p92 = scmp.eq.s32.totalorder %s91, 0
    %s94 = sadd.s32 %s93, 1
    %s95 = scalar_select %p92, %s93, %s94
    %p98 = pneg %p92
    %p99 = scmp.eq.s32.totalorder %s10, 3
    %p100 = por %p98, %p99
    %p101 = scmp.ne.s32.totalorder %s93, %s96
    %p102 = scmp.eq.s32.totalorder %s10, 0
    %p103 = por %p101, %p102
    %p104 = scmp.ne.s32.totalorder %s93, %s96
    %p105 = scmp.eq.s32.totalorder %s15, 3
    %p106 = por %p104, %p105
    %p107 = scmp.ne.s32.totalorder %s96, %s97
    %p108 = scmp.eq.s32.totalorder %s15, 0
    %p109 = por %p107, %p108
    %p110 = scmp.ne.s32.totalorder %s96, %s97
    %p111 = scmp.eq.s32.totalorder %s16, 3
    %p112 = por %p110, %p111
    %p114 = scmp.ne.s32.totalorder %s97, %s113
    %p115 = scmp.eq.s32.totalorder %s16, 0
    %p116 = por %p114, %p115
    %s117 = ssub.s32 %s19, %s28
    %p118 = scmp.eq.s32.totalorder %s117, 0
    %s120 = sadd.s32 %s119, 1
    %s121 = scalar_select %p118, %s119, %s120
    %p124 = pneg %p118
    %p125 = scmp.eq.s32.totalorder %s10, 3
    %p126 = por %p124, %p125
    %p127 = scmp.ne.s32.totalorder %s119, %s122
    %p128 = scmp.eq.s32.totalorder %s10, 0
    %p129 = por %p127, %p128
    %p130 = scmp.ne.s32.totalorder %s119, %s122
    %p131 = scmp.eq.s32.totalorder %s15, 3
    %p132 = por %p130, %p131
    %p133 = scmp.ne.s32.totalorder %s122, %s123
    %p134 = scmp.eq.s32.totalorder %s15, 0
    %p135 = por %p133, %p134
    %p136 = scmp.ne.s32.totalorder %s122, %s123
    %p137 = scmp.eq.s32.totalorder %s16, 3
    %p138 = por %p136, %p137
    %p140 = scmp.ne.s32.totalorder %s123, %s139
    %p141 = scmp.eq.s32.totalorder %s16, 0
    %p142 = por %p140, %p141
    %s143 = ssub.s32 %s17, %s36
    %s144 = ssub.s32 %s18, %s32
    %s145 = sor.u32 %s143, %s144
    %s146 = ssub.s32 %s19, %s28
    %s147 = sor.u32 %s145, %s146
    %p148 = scmp.eq.s32.totalorder %s147, 0
    %s150 = sadd.s32 %s149, 1
    %s151 = scalar_select %p148, %s149, %s150
    %p154 = pneg %p148
    %p155 = scmp.eq.s32.totalorder %s10, 3
    %p156 = por %p154, %p155
    %p157 = scmp.ne.s32.totalorder %s149, %s152
    %p158 = scmp.eq.s32.totalorder %s10, 0
    %p159 = por %p157, %p158
    %p160 = scmp.ne.s32.totalorder %s149, %s152
    %p161 = scmp.eq.s32.totalorder %s15, 3
    %p162 = por %p160, %p161
    %p163 = scmp.ne.s32.totalorder %s152, %s153
    %p164 = scmp.eq.s32.totalorder %s15, 0
    %p165 = por %p163, %p164
    %p166 = scmp.ne.s32.totalorder %s152, %s153
    %p167 = scmp.eq.s32.totalorder %s16, 3
    %p168 = por %p166, %p167
    %p170 = scmp.ne.s32.totalorder %s153, %s169
    %p171 = scmp.eq.s32.totalorder %s16, 0
    %p172 = por %p170, %p171
    %p173 = scmp.le.s32.totalorder 1, %s10
    %p174 = scmp.lt.s32.totalorder %s10, 5
    %p175 = pnand %p173, %p174
    %p176 = pneg %p175
    // Predicated region
    $region9: #{conv_bn_silu.1} parent=5 // pred_check
      _
    $region10: #{conv_bn_silu.1} parent=5 // pred_check_branch
      %178 = sbr.rel (%p175) target = $region12
    $region11: #{conv_bn_silu.1} parent=5 // pred_region
      %s179 = ssub.s32 %s10, 1
      // Predicated region
      $region13: #{conv_bn_silu.1} parent=11 // pred_check
        %p180 = pneg %p83
      $region14: #{conv_bn_silu.1} parent=11 // pred_check_branch
        %182 = sbr.rel (%p180) target = $region16
      $region15: #{conv_bn_silu.1} parent=11 // pred_region
        %p183 = scmp.lt.s32.totalorder %s22, 0
        %s184 = scalar_select %p183, %s22, 0
        %s185 = smul.addr %s184, 4
        %s186 = scalar_lea.vmem %s1, %s185
      $region16: #{conv_bn_silu.1} parent=11 // pred_fallthru
        _
      // Predicated region
      $region17: #{conv_bn_silu.1} parent=11 // pred_check
        %p187 = pneg %p109
      $region18: #{conv_bn_silu.1} parent=11 // pred_check_branch
        %189 = sbr.rel (%p187) target = $region20
      $region19: #{conv_bn_silu.1} parent=11 // pred_region
        %p190 = scmp.lt.s32.totalorder %s22, 0
        %s191 = scalar_select %p190, %s22, 0
        %s192 = scalar_lea.vmem %s2, %s191
      $region20: #{conv_bn_silu.1} parent=11 // pred_fallthru
        _
      // Predicated region
      $region21: #{conv_bn_silu.1} parent=11 // pred_check
        %p193 = pneg %p135
      $region22: #{conv_bn_silu.1} parent=11 // pred_check_branch
        %195 = sbr.rel (%p193) target = $region24
      $region23: #{conv_bn_silu.1} parent=11 // pred_region
        %p196 = scmp.lt.s32.totalorder %s22, 0
        %s197 = scalar_select %p196, %s22, 0
        %s198 = scalar_lea.vmem %s3, %s197
      $region24: #{conv_bn_silu.1} parent=11 // pred_fallthru
        _
    $region12: #{conv_bn_silu.1} parent=5 // pred_fallthru
      _
    %p199 = scmp.lt.s32.totalorder %s10, 4
    // Predicated region
    $region25: #{conv_bn_silu.1} parent=5 // pred_check
      %p200 = pneg %p199
    $region26: #{conv_bn_silu.1} parent=5 // pred_check_branch
      %202 = sbr.rel (%p200) target = $region28
    $region27: #{conv_bn_silu.1} parent=5 // pred_region
      // Predicated region
      $region29: #{conv_bn_silu.1} parent=27 // pred_check
        %p203 = pneg %p51
      $region30: #{conv_bn_silu.1} parent=27 // pred_check_branch
        %205 = sbr.rel (%p203) target = $region32
      $region31: #{conv_bn_silu.1} parent=27 // pred_region
        %p206 = scmp.lt.s32.totalorder %s17, 1
        %s207 = scalar_select %p206, %s17, 1
        %p208 = scmp.lt.s32.totalorder %s18, 1
        %s209 = scalar_select %p208, %s18, 1
        %s210 = smul.addr %s209, 24
        %s211 = smul.addr %s207, 48
        %s212 = sadd.s32 %s210, %s211
        %s213 = smul.addr %s212, 4
        %s214 = scalar_lea.vmem %s0, %s213
      $region32: #{conv_bn_silu.1} parent=27 // pred_fallthru
        _
    $region28: #{conv_bn_silu.1} parent=5 // pred_fallthru
      _
    %p215 = scmp.le.s32.totalorder 1, %s10
    %p216 = scmp.lt.s32.totalorder %s10, 5
    %p217 = pnand %p215, %p216
    %p218 = pneg %p217
    // Predicated region
    $region33: #{conv_bn_silu.1} parent=5 // pred_check
      _
    $region34: #{conv_bn_silu.1} parent=5 // pred_check_branch
      %220 = sbr.rel (%p217) target = $region36
    $region35: #{conv_bn_silu.1} parent=5 // pred_region
      %s221 = ssub.s32 %s10, 1
      %p222 = scmp.lt.s32.totalorder %s20, 1
      %s223 = scalar_select %p222, %s20, 1
      %p224 = scmp.lt.s32.totalorder %s21, 1
      %s225 = scalar_select %p224, %s21, 1
      %s226 = smul.addr %s225, 24
      %s227 = smul.addr %s223, 48
      %s228 = sadd.s32 %s226, %s227
      %s229 = smul.addr %s228, 4
      %s230 = scalar_lea.vmem %s0, %s229
      %p231 = pneg %p57
      %p232 = pneg %p54
      %p233 = scmp.lt.s32.totalorder %s22, 0
      %s234 = scalar_select %p233, %s22, 0
      %s235 = smul.addr %s234, 4
      %s236 = scalar_lea.vmem %s1, %s235
      %p237 = pneg %p83
      %p238 = pneg %p80
      %p239 = scmp.lt.s32.totalorder %s22, 0
      %s240 = scalar_select %p239, %s22, 0
      %s241 = scalar_lea.vmem %s2, %s240
      %p242 = pneg %p109
      %p243 = pneg %p106
      %p244 = scmp.lt.s32.totalorder %s22, 0
      %s245 = scalar_select %p244, %s22, 0
      %s246 = scalar_lea.vmem %s3, %s245
      %p247 = pneg %p135
      %p248 = pneg %p132
      %p249 = pneg %p165
      %p250 = pneg %p162
      %s251 = smul.u32 24, %s21
      %p252 = scmp.lt.s32.totalorder %s20, 1
      %s253 = scalar_select %p252, %s20, 1
      %p254 = scmp.lt.s32.totalorder %s251, 47
      %s255 = scalar_select %p254, %s251, 47
      %p256 = scmp.lt.s32.totalorder %s22, 0
      %s257 = scalar_select %p256, %s22, 0
      %s258 = sadd.s32 %s257, %s255
      %s259 = smul.addr %s253, 48
      %s260 = sadd.s32 %s258, %s259
      %s261 = smul.addr %s260, 4
      %s262 = scalar_lea.vmem %s4, %s261
      %p263 = scmp.lt.s32.totalorder %s20, 1
      %s264 = scalar_select %p263, %s20, 1
      %p265 = scmp.lt.s32.totalorder %s21, 1
      %s266 = scalar_select %p265, %s21, 1
      %s267 = smul.addr %s266, 24
      %s268 = smul.addr %s264, 48
      %s269 = sadd.s32 %s267, %s268
      %s270 = smul.addr %s269, 4
      %s271 = scalar_lea.vmem %s0, %s270
      %p272 = scmp.lt.s32.totalorder %s22, 0
      %s273 = scalar_select %p272, %s22, 0
      %s274 = smul.addr %s273, 4
      %s275 = scalar_lea.vmem %s1, %s274
      %p276 = scmp.lt.s32.totalorder %s22, 0
      %s277 = scalar_select %p276, %s22, 0
      %s278 = scalar_lea.vmem %s2, %s277
      %p279 = scmp.lt.s32.totalorder %s22, 0
      %s280 = scalar_select %p279, %s22, 0
      %s281 = scalar_lea.vmem %s3, %s280
      %s282 = smul.u32 24, %s21
      %p283 = scmp.lt.s32.totalorder %s20, 1
      %s284 = scalar_select %p283, %s20, 1
      %p285 = scmp.lt.s32.totalorder %s282, 47
      %s286 = scalar_select %p285, %s282, 47
      %p287 = scmp.lt.s32.totalorder %s22, 0
      %s288 = scalar_select %p287, %s22, 0
      %s289 = sadd.s32 %s288, %s286
      %s290 = smul.addr %s284, 48
      %s291 = sadd.s32 %s289, %s290
      %s292 = smul.addr %s291, 4
      %s293 = scalar_lea.vmem %s4, %s292
      %s294 = smul.u32 24, %s21
      %v296 = vld [vmem:[%s271] sm:$0xf]
      %v297 = vld [vmem:[%s271 + $0x4] sm:$0xf]
      %v298 = vld [vmem:[%s271 + $0x8] sm:$0xf]
      %v299 = vld [vmem:[%s271 + $0xc] sm:$0xf]
      %v300 = vld [vmem:[%s271 + $0x10] sm:$0xf]
      %v301 = vld [vmem:[%s271 + $0x14] sm:$0xf]
      %v302 = vld [vmem:[%s271 + $0x18] sm:$0xf]
      %v303 = vld [vmem:[%s271 + $0x1c] sm:$0xf]
      %v304 = vld [vmem:[%s271 + $0x20] sm:$0xf]
      %v305 = vld [vmem:[%s271 + $0x24] sm:$0xf]
      %v306 = vld [vmem:[%s271 + $0x28] sm:$0xf]
      %v307 = vld [vmem:[%s271 + $0x2c] sm:$0xf]
      %v308 = vld [vmem:[%s271 + $0x30] sm:$0xf]
      %v309 = vld [vmem:[%s271 + $0x34] sm:$0xf]
      %v310 = vld [vmem:[%s271 + $0x38] sm:$0xf]
      %v311 = vld [vmem:[%s271 + $0x3c] sm:$0xf]
      %v312 = vld [vmem:[%s271 + $0x40] sm:$0xf]
      %v313 = vld [vmem:[%s271 + $0x44] sm:$0xf]
      %v314 = vld [vmem:[%s271 + $0x48] sm:$0xf]
      %v315 = vld [vmem:[%s271 + $0x4c] sm:$0xf]
      %v316 = vld [vmem:[%s271 + $0x50] sm:$0xf]
      %v317 = vld [vmem:[%s271 + $0x54] sm:$0xf]
      %v318 = vld [vmem:[%s271 + $0x58] sm:$0xf]
      %v319 = vld [vmem:[%s271 + $0x5c] sm:$0xf]
      %v320 = vld [vmem:[%s275] sm:$0xf]
      %v321 = vld [vmem:[%s275 + $0x4] sm:$0xf]
      %v322 = vld [vmem:[%s275 + $0x8] sm:$0xf]
      %v323 = vld [vmem:[%s275 + $0xc] sm:$0xf]
      %v324 = vld [vmem:[%s275 + $0x10] sm:$0x3]
      %v349 = vunpack.c.l.b16 %v296
      %v350 = vunpack.c.l.b16 %v297
      %v351 = vunpack.c.l.b16 %v298
      %v352 = vunpack.c.l.b16 %v299
      %v353 = vunpack.c.l.b16 %v300
      %v354 = vunpack.c.l.b16 %v301
      %v355 = vunpack.c.l.b16 %v302
      %v356 = vunpack.c.l.b16 %v303
      %v357 = vunpack.c.l.b16 %v304
      %v358 = vunpack.c.l.b16 %v305
      %v359 = vunpack.c.l.b16 %v306
      %v360 = vunpack.c.l.b16 %v307
      %v361 = vunpack.c.l.b16 %v308
      %v362 = vunpack.c.l.b16 %v309
      %v363 = vunpack.c.l.b16 %v310
      %v364 = vunpack.c.l.b16 %v311
      %v365 = vunpack.c.l.b16 %v312
      %v366 = vunpack.c.l.b16 %v313
      %v367 = vunpack.c.l.b16 %v314
      %v368 = vunpack.c.l.b16 %v315
      %v369 = vunpack.c.l.b16 %v316
      %v370 = vunpack.c.l.b16 %v317
      %v371 = vunpack.c.l.b16 %v318
      %v372 = vunpack.c.l.b16 %v319
      %v373 = vpack.c.b16 %v350, %v349
      %v374 = vpack.c.b16 %v352, %v351
      %v375 = vpack.c.b16 %v354, %v353
      %v376 = vpack.c.b16 %v356, %v355
      %v377 = vpack.c.b16 %v358, %v357
      %v378 = vpack.c.b16 %v360, %v359
      %v379 = vpack.c.b16 %v362, %v361
      %v380 = vpack.c.b16 %v364, %v363
      %v381 = vpack.c.b16 %v366, %v365
      %v382 = vpack.c.b16 %v368, %v367
      %v383 = vpack.c.b16 %v370, %v369
      %v384 = vpack.c.b16 %v372, %v371
      %v390 = vunpack.c.l.b16 %v320
      %v391 = vunpack.c.l.b16 %v321
      %v392 = vunpack.c.l.b16 %v322
      %v393 = vunpack.c.l.b16 %v323
      %v394 = vunpack.c.l.b16 %v324
      %v395 = vpack.c.b16 %v391, %v390
      %v396 = vpack.c.b16 %v393, %v392
      %v397 = vpack.c.b16 %v394, %v394
      %vm400 = vcmask 293888
      %v402 = vsel %vm400, %v373, 0
      %v405 = vsel %vm400, %v374, 0
      %v408 = vsel %vm400, %v375, 0
      %v411 = vsel %vm400, %v376, 0
      %v414 = vsel %vm400, %v377, 0
      %v417 = vsel %vm400, %v378, 0
      %v420 = vsel %vm400, %v379, 0
      %v423 = vsel %vm400, %v380, 0
      %v426 = vsel %vm400, %v381, 0
      %v429 = vsel %vm400, %v382, 0
      %v432 = vsel %vm400, %v383, 0
      %v435 = vsel %vm400, %v384, 0
      %vm437 = vcmask 1041408
      %v439 = vsel %vm437, %v397, 0
      %441 = vmatprep.subr.bf16.mxu0 0
      %442 = vmatpush1.bf16.msra.mxu0 %v395
      %443 = vmatprep.subr.bf16.mxu0 0
      %444 = vmatpush1.bf16.msra.mxu0 %v396
      %445 = vmatprep.subr.bf16.mxu0 0
      %446 = vmatpush1.bf16.msra.mxu0 %v439
      %447 = vmatprep.subr.bf16.mxu0 0
      %448 = vmatpush1.bf16.msra.mxu0 0
      %449 = vmatprep.subr.bf16.mxu0 0
      %450 = vmatpush1.bf16.msra.mxu0 0
      %451 = vmatprep.subr.bf16.mxu0 0
      %452 = vmatpush1.bf16.msra.mxu0 0
      %453 = vmatprep.subr.bf16.mxu0 0
      %454 = vmatpush1.bf16.msra.mxu0 0
      %455 = vmatprep.subr.bf16.mxu0 0
      %456 = vmatpush1.bf16.msra.mxu0 0
      %457 = vmatprep.subr.bf16.mxu0 0
      %458 = vmatpush1.bf16.msra.mxu0 0
      %459 = vmatprep.subr.bf16.mxu0 0
      %460 = vmatpush1.bf16.msra.mxu0 0
      %461 = vmatprep.subr.bf16.mxu0 0
      %462 = vmatpush1.bf16.msra.mxu0 0
      %463 = vmatprep.subr.bf16.mxu0 0
      %464 = vmatpush1.bf16.msra.mxu0 0
      %465 = vmatprep.subr.bf16.mxu0 0
      %466 = vmatpush1.bf16.msra.mxu0 0
      %467 = vmatprep.subr.bf16.mxu0 0
      %468 = vmatpush1.bf16.msra.mxu0 0
      %469 = vmatprep.subr.bf16.mxu0 0
      %470 = vmatpush1.bf16.msra.mxu0 0
      %471 = vmatprep.subr.bf16.mxu0 0
      %472 = vmatpush1.bf16.msra.mxu0 0
      %473 = vmatprep.mubr.bf16.mxu0 0
      %474 = vmatmul.mubr.bf16.gmra.mrb[0].mxu0 %v402
      %v475 = vpop.f32.mrb[0].mxu0
      %v476 = vadd.f32 0.0, %v475
      %v477 = vpop.f32.mrb[0].mxu0
      %v478 = vpop.f32.mrb[0].mxu0
      %v479 = vadd.f32 0.0, %v478
      %v480 = vpop.f32.mrb[0].mxu0
      %481 = vmatprep.mubr.bf16.mxu0 0
      %482 = vmatmul.mubr.bf16.gmra.mrb[0].mxu0 %v405
      %v483 = vpop.f32.mrb[0].mxu0
      %v484 = vadd.f32 0.0, %v483
      %v485 = vpop.f32.mrb[0].mxu0
      %v486 = vpop.f32.mrb[0].mxu0
      %v487 = vadd.f32 0.0, %v486
      %v488 = vpop.f32.mrb[0].mxu0
      %489 = vmatprep.mubr.bf16.mxu0 0
      %490 = vmatmul.mubr.bf16.gmra.mrb[0].mxu0 %v408
      %v491 = vpop.f32.mrb[0].mxu0
      %v492 = vadd.f32 0.0, %v491
      %v493 = vpop.f32.mrb[0].mxu0
      %v494 = vpop.f32.mrb[0].mxu0
      %v495 = vadd.f32 0.0, %v494
      %v496 = vpop.f32.mrb[0].mxu0
      %497 = vmatprep.mubr.bf16.mxu0 0
      %498 = vmatmul.mubr.bf16.gmra.mrb[0].mxu0 %v411
      %v499 = vpop.f32.mrb[0].mxu0
      %v500 = vadd.f32 0.0, %v499
      %v501 = vpop.f32.mrb[0].mxu0
      %v502 = vpop.f32.mrb[0].mxu0
      %v503 = vadd.f32 0.0, %v502
      %v504 = vpop.f32.mrb[0].mxu0
      %505 = vmatprep.mubr.bf16.mxu0 0
      %506 = vmatmul.mubr.bf16.gmra.mrb[0].mxu0 %v414
      %v507 = vpop.f32.mrb[0].mxu0
      %v508 = vadd.f32 0.0, %v507
      %v509 = vpop.f32.mrb[0].mxu0
      %v510 = vpop.f32.mrb[0].mxu0
      %v511 = vadd.f32 0.0, %v510
      %v512 = vpop.f32.mrb[0].mxu0
      %513 = vmatprep.mubr.bf16.mxu0 0
      %514 = vmatmul.mubr.bf16.gmra.mrb[0].mxu0 %v417
      %v515 = vpop.f32.mrb[0].mxu0
      %v516 = vadd.f32 0.0, %v515
      %v517 = vpop.f32.mrb[0].mxu0
      %v518 = vpop.f32.mrb[0].mxu0
      %v519 = vadd.f32 0.0, %v518
      %v520 = vpop.f32.mrb[0].mxu0
      %521 = vmatprep.mubr.bf16.mxu0 0
      %522 = vmatmul.mubr.bf16.gmra.mrb[0].mxu0 %v420
      %v523 = vpop.f32.mrb[0].mxu0
      %v524 = vadd.f32 0.0, %v523
      %v525 = vpop.f32.mrb[0].mxu0
      %v526 = vpop.f32.mrb[0].mxu0
      %v527 = vadd.f32 0.0, %v526
      %v528 = vpop.f32.mrb[0].mxu0
      %529 = vmatprep.mubr.bf16.mxu0 0
      %530 = vmatmul.mubr.bf16.gmra.mrb[0].mxu0 %v423
      %v531 = vpop.f32.mrb[0].mxu0
      %v532 = vadd.f32 0.0, %v531
      %v533 = vpop.f32.mrb[0].mxu0
      %v534 = vpop.f32.mrb[0].mxu0
      %v535 = vadd.f32 0.0, %v534
      %v536 = vpop.f32.mrb[0].mxu0
      %537 = vmatprep.mubr.bf16.mxu0 0
      %538 = vmatmul.mubr.bf16.gmra.mrb[0].mxu0 %v426
      %v539 = vpop.f32.mrb[0].mxu0
      %v540 = vadd.f32 0.0, %v539
      %v541 = vpop.f32.mrb[0].mxu0
      %v542 = vpop.f32.mrb[0].mxu0
      %v543 = vadd.f32 0.0, %v542
      %v544 = vpop.f32.mrb[0].mxu0
      %545 = vmatprep.mubr.bf16.mxu0 0
      %546 = vmatmul.mubr.bf16.gmra.mrb[0].mxu0 %v429
      %v547 = vpop.f32.mrb[0].mxu0
      %v548 = vadd.f32 0.0, %v547
      %v549 = vpop.f32.mrb[0].mxu0
      %v550 = vpop.f32.mrb[0].mxu0
      %v551 = vadd.f32 0.0, %v550
      %v552 = vpop.f32.mrb[0].mxu0
      %553 = vmatprep.mubr.bf16.mxu0 0
      %554 = vmatmul.mubr.bf16.gmra.mrb[0].mxu0 %v432
      %v555 = vpop.f32.mrb[0].mxu0
      %v556 = vadd.f32 0.0, %v555
      %v557 = vpop.f32.mrb[0].mxu0
      %v558 = vpop.f32.mrb[0].mxu0
      %v559 = vadd.f32 0.0, %v558
      %v560 = vpop.f32.mrb[0].mxu0
      %561 = vmatprep.mubr.bf16.mxu0 0
      %562 = vmatmul.mubr.bf16.gmra.mrb[0].mxu0 %v435
      %v563 = vpop.f32.mrb[0].mxu0
      %v564 = vadd.f32 0.0, %v563
      %v565 = vpop.f32.mrb[0].mxu0
      %v566 = vpop.f32.mrb[0].mxu0
      %v567 = vadd.f32 0.0, %v566
      %v568 = vpop.f32.mrb[0].mxu0
      %569 = vdwg.mxu0
      %v570 = vld [vmem:[%s278] sm:$0x1]
      %v572 = vlaneseq
      %v573 = vshrl.u32 %v572, 7
      %v574 = vsub.s32 0, %v573
      %v575 = vrot.slane %v570, %v574
      %v577 = vmul.f32 %v476, %v575
      %v578 = vmul.f32 %v479, %v575
      %v579 = vmul.f32 %v484, %v575
      %v580 = vmul.f32 %v487, %v575
      %v581 = vmul.f32 %v492, %v575
      %v582 = vmul.f32 %v495, %v575
      %v583 = vmul.f32 %v500, %v575
      %v584 = vmul.f32 %v503, %v575
      %v585 = vmul.f32 %v508, %v575
      %v586 = vmul.f32 %v511, %v575
      %v587 = vmul.f32 %v516, %v575
      %v588 = vmul.f32 %v519, %v575
      %v589 = vmul.f32 %v524, %v575
      %v590 = vmul.f32 %v527, %v575
      %v591 = vmul.f32 %v532, %v575
      %v592 = vmul.f32 %v535, %v575
      %v593 = vmul.f32 %v540, %v575
      %v594 = vmul.f32 %v543, %v575
      %v595 = vmul.f32 %v548, %v575
      %v596 = vmul.f32 %v551, %v575
      %v597 = vmul.f32 %v556, %v575
      %v598 = vmul.f32 %v559, %v575
      %v599 = vmul.f32 %v564, %v575
      %v600 = vmul.f32 %v567, %v575
      %v601 = vld [vmem:[%s281] sm:$0x1]
      %v603 = vlaneseq
      %v604 = vshrl.u32 %v603, 7
      %v605 = vsub.s32 0, %v604
      %v606 = vrot.slane %v601, %v605
      %v608 = vadd.f32 %v577, %v606
      %v609 = vadd.f32 %v578, %v606
      %v610 = vadd.f32 %v579, %v606
      %v611 = vadd.f32 %v580, %v606
      %v612 = vadd.f32 %v581, %v606
      %v613 = vadd.f32 %v582, %v606
      %v614 = vadd.f32 %v583, %v606
      %v615 = vadd.f32 %v584, %v606
      %v616 = vadd.f32 %v585, %v606
      %v617 = vadd.f32 %v586, %v606
      %v618 = vadd.f32 %v587, %v606
      %v619 = vadd.f32 %v588, %v606
      %v620 = vadd.f32 %v589, %v606
      %v621 = vadd.f32 %v590, %v606
      %v622 = vadd.f32 %v591, %v606
      %v623 = vadd.f32 %v592, %v606
      %v624 = vadd.f32 %v593, %v606
      %v625 = vadd.f32 %v594, %v606
      %v626 = vadd.f32 %v595, %v606
      %v627 = vadd.f32 %v596, %v606
      %v628 = vadd.f32 %v597, %v606
      %v629 = vadd.f32 %v598, %v606
      %v630 = vadd.f32 %v599, %v606
      %v631 = vadd.f32 %v600, %v606
      %v632 = vxor.u32 %v608, 2147483648
      %v633 = vxor.u32 %v609, 2147483648
      %v634 = vxor.u32 %v610, 2147483648
      %v635 = vxor.u32 %v611, 2147483648
      %v636 = vxor.u32 %v612, 2147483648
      %v637 = vxor.u32 %v613, 2147483648
      %v638 = vxor.u32 %v614, 2147483648
      %v639 = vxor.u32 %v615, 2147483648
      %v640 = vxor.u32 %v616, 2147483648
      %v641 = vxor.u32 %v617, 2147483648
      %v642 = vxor.u32 %v618, 2147483648
      %v643 = vxor.u32 %v619, 2147483648
      %v644 = vxor.u32 %v620, 2147483648
      %v645 = vxor.u32 %v621, 2147483648
      %v646 = vxor.u32 %v622, 2147483648
      %v647 = vxor.u32 %v623, 2147483648
      %v648 = vxor.u32 %v624, 2147483648
      %v649 = vxor.u32 %v625, 2147483648
      %v650 = vxor.u32 %v626, 2147483648
      %v651 = vxor.u32 %v627, 2147483648
      %v652 = vxor.u32 %v628, 2147483648
      %v653 = vxor.u32 %v629, 2147483648
      %v654 = vxor.u32 %v630, 2147483648
      %v655 = vxor.u32 %v631, 2147483648
      %v656 = vmul.f32 %v632, 1.442695
      %v657 = vpow.pop %v656
      %v658 = vmul.f32 %v633, 1.442695
      %v659 = vpow.pop %v658
      %v660 = vmul.f32 %v634, 1.442695
      %v661 = vpow.pop %v660
      %v662 = vmul.f32 %v635, 1.442695
      %v663 = vpow.pop %v662
      %v664 = vmul.f32 %v636, 1.442695
      %v665 = vpow.pop %v664
      %v666 = vmul.f32 %v637, 1.442695
      %v667 = vpow.pop %v666
      %v668 = vmul.f32 %v638, 1.442695
      %v669 = vpow.pop %v668
      %v670 = vmul.f32 %v639, 1.442695
      %v671 = vpow.pop %v670
      %v672 = vmul.f32 %v640, 1.442695
      %v673 = vpow.pop %v672
      %v674 = vmul.f32 %v641, 1.442695
      %v675 = vpow.pop %v674
      %v676 = vmul.f32 %v642, 1.442695
      %v677 = vpow.pop %v676
      %v678 = vmul.f32 %v643, 1.442695
      %v679 = vpow.pop %v678
      %v680 = vmul.f32 %v644, 1.442695
      %v681 = vpow.pop %v680
      %v682 = vmul.f32 %v645, 1.442695
      %v683 = vpow.pop %v682
      %v684 = vmul.f32 %v646, 1.442695
      %v685 = vpow.pop %v684
      %v686 = vmul.f32 %v647, 1.442695
      %v687 = vpow.pop %v686
      %v688 = vmul.f32 %v648, 1.442695
      %v689 = vpow.pop %v688
      %v690 = vmul.f32 %v649, 1.442695
      %v691 = vpow.pop %v690
      %v692 = vmul.f32 %v650, 1.442695
      %v693 = vpow.pop %v692
      %v694 = vmul.f32 %v651, 1.442695
      %v695 = vpow.pop %v694
      %v696 = vmul.f32 %v652, 1.442695
      %v697 = vpow.pop %v696
      %v698 = vmul.f32 %v653, 1.442695
      %v699 = vpow.pop %v698
      %v700 = vmul.f32 %v654, 1.442695
      %v701 = vpow.pop %v700
      %v702 = vmul.f32 %v655, 1.442695
      %v703 = vpow.pop %v702
      %v704 = vadd.f32 %v657, 1.0
      %v705 = vadd.f32 %v659, 1.0
      %v706 = vadd.f32 %v661, 1.0
      %v707 = vadd.f32 %v663, 1.0
      %v708 = vadd.f32 %v665, 1.0
      %v709 = vadd.f32 %v667, 1.0
      %v710 = vadd.f32 %v669, 1.0
      %v711 = vadd.f32 %v671, 1.0
      %v712 = vadd.f32 %v673, 1.0
      %v713 = vadd.f32 %v675, 1.0
      %v714 = vadd.f32 %v677, 1.0
      %v715 = vadd.f32 %v679, 1.0
      %v716 = vadd.f32 %v681, 1.0
      %v717 = vadd.f32 %v683, 1.0
      %v718 = vadd.f32 %v685, 1.0
      %v719 = vadd.f32 %v687, 1.0
      %v720 = vadd.f32 %v689, 1.0
      %v721 = vadd.f32 %v691, 1.0
      %v722 = vadd.f32 %v693, 1.0
      %v723 = vadd.f32 %v695, 1.0
      %v724 = vadd.f32 %v697, 1.0
      %v725 = vadd.f32 %v699, 1.0
      %v726 = vadd.f32 %v701, 1.0
      %v727 = vadd.f32 %v703, 1.0
      %v728 = vrcp.pop %v704
      %v729 = vmul.f32 1.0, %v728
      %v730 = vrcp.pop %v705
      %v731 = vmul.f32 1.0, %v730
      %v732 = vrcp.pop %v706
      %v733 = vmul.f32 1.0, %v732
      %v734 = vrcp.pop %v707
      %v735 = vmul.f32 1.0, %v734
      %v736 = vrcp.pop %v708
      %v737 = vmul.f32 1.0, %v736
      %v738 = vrcp.pop %v709
      %v739 = vmul.f32 1.0, %v738
      %v740 = vrcp.pop %v710
      %v741 = vmul.f32 1.0, %v740
      %v742 = vrcp.pop %v711
      %v743 = vmul.f32 1.0, %v742
      %v744 = vrcp.pop %v712
      %v745 = vmul.f32 1.0, %v744
      %v746 = vrcp.pop %v713
      %v747 = vmul.f32 1.0, %v746
      %v748 = vrcp.pop %v714
      %v749 = vmul.f32 1.0, %v748
      %v750 = vrcp.pop %v715
      %v751 = vmul.f32 1.0, %v750
      %v752 = vrcp.pop %v716
      %v753 = vmul.f32 1.0, %v752
      %v754 = vrcp.pop %v717
      %v755 = vmul.f32 1.0, %v754
      %v756 = vrcp.pop %v718
      %v757 = vmul.f32 1.0, %v756
      %v758 = vrcp.pop %v719
      %v759 = vmul.f32 1.0, %v758
      %v760 = vrcp.pop %v720
      %v761 = vmul.f32 1.0, %v760
      %v762 = vrcp.pop %v721
      %v763 = vmul.f32 1.0, %v762
      %v764 = vrcp.pop %v722
      %v765 = vmul.f32 1.0, %v764
      %v766 = vrcp.pop %v723
      %v767 = vmul.f32 1.0, %v766
      %v768 = vrcp.pop %v724
      %v769 = vmul.f32 1.0, %v768
      %v770 = vrcp.pop %v725
      %v771 = vmul.f32 1.0, %v770
      %v772 = vrcp.pop %v726
      %v773 = vmul.f32 1.0, %v772
      %v774 = vrcp.pop %v727
      %v775 = vmul.f32 1.0, %v774
      %v776 = vmul.f32 %v608, %v729
      %v777 = vmul.f32 %v609, %v731
      %v778 = vmul.f32 %v610, %v733
      %v779 = vmul.f32 %v611, %v735
      %v780 = vmul.f32 %v612, %v737
      %v781 = vmul.f32 %v613, %v739
      %v782 = vmul.f32 %v614, %v741
      %v783 = vmul.f32 %v615, %v743
      %v784 = vmul.f32 %v616, %v745
      %v785 = vmul.f32 %v617, %v747
      %v786 = vmul.f32 %v618, %v749
      %v787 = vmul.f32 %v619, %v751
      %v788 = vmul.f32 %v620, %v753
      %v789 = vmul.f32 %v621, %v755
      %v790 = vmul.f32 %v622, %v757
      %v791 = vmul.f32 %v623, %v759
      %v792 = vmul.f32 %v624, %v761
      %v793 = vmul.f32 %v625, %v763
      %v794 = vmul.f32 %v626, %v765
      %v795 = vmul.f32 %v627, %v767
      %v796 = vmul.f32 %v628, %v769
      %v797 = vmul.f32 %v629, %v771
      %v798 = vmul.f32 %v630, %v773
      %v799 = vmul.f32 %v631, %v775
      %v800 = vpack.c.bf16 %v777, %v776
      %v801 = vpack.c.bf16 %v779, %v778
      %v802 = vpack.c.bf16 %v781, %v780
      %v803 = vpack.c.bf16 %v783, %v782
      %v804 = vpack.c.bf16 %v785, %v784
      %v805 = vpack.c.bf16 %v787, %v786
      %v806 = vpack.c.bf16 %v789, %v788
      %v807 = vpack.c.bf16 %v791, %v790
      %v808 = vpack.c.bf16 %v793, %v792
      %v809 = vpack.c.bf16 %v795, %v794
      %v810 = vpack.c.bf16 %v797, %v796
      %v811 = vpack.c.bf16 %v799, %v798
      %v824 = vunpack.c.l.b16 %v800
      %v825 = vunpack.c.h.b16 %v800
      %v826 = vunpack.c.l.b16 %v801
      %v827 = vunpack.c.h.b16 %v801
      %v828 = vunpack.c.l.b16 %v802
      %v829 = vunpack.c.h.b16 %v802
      %v830 = vunpack.c.l.b16 %v803
      %v831 = vunpack.c.h.b16 %v803
      %v832 = vunpack.c.l.b16 %v804
      %v833 = vunpack.c.h.b16 %v804
      %v834 = vunpack.c.l.b16 %v805
      %v835 = vunpack.c.h.b16 %v805
      %v836 = vunpack.c.l.b16 %v806
      %v837 = vunpack.c.h.b16 %v806
      %v838 = vunpack.c.l.b16 %v807
      %v839 = vunpack.c.h.b16 %v807
      %v840 = vunpack.c.l.b16 %v808
      %v841 = vunpack.c.h.b16 %v808
      %v842 = vunpack.c.l.b16 %v809
      %v843 = vunpack.c.h.b16 %v809
      %v844 = vunpack.c.l.b16 %v810
      %v845 = vunpack.c.h.b16 %v810
      %v846 = vunpack.c.l.b16 %v811
      %v847 = vunpack.c.h.b16 %v811
      %v848 = vpack.c.b16 %v824, %v824
      %v849 = vpack.c.b16 %v825, %v825
      %v850 = vpack.c.b16 %v826, %v826
      %v851 = vpack.c.b16 %v827, %v827
      %v852 = vpack.c.b16 %v828, %v828
      %v853 = vpack.c.b16 %v829, %v829
      %v854 = vpack.c.b16 %v830, %v830
      %v855 = vpack.c.b16 %v831, %v831
      %v856 = vpack.c.b16 %v832, %v832
      %v857 = vpack.c.b16 %v833, %v833
      %v858 = vpack.c.b16 %v834, %v834
      %v859 = vpack.c.b16 %v835, %v835
      %v860 = vpack.c.b16 %v836, %v836
      %v861 = vpack.c.b16 %v837, %v837
      %v862 = vpack.c.b16 %v838, %v838
      %v863 = vpack.c.b16 %v839, %v839
      %v864 = vpack.c.b16 %v840, %v840
      %v865 = vpack.c.b16 %v841, %v841
      %v866 = vpack.c.b16 %v842, %v842
      %v867 = vpack.c.b16 %v843, %v843
      %v868 = vpack.c.b16 %v844, %v844
      %v869 = vpack.c.b16 %v845, %v845
      %v870 = vpack.c.b16 %v846, %v846
      %v871 = vpack.c.b16 %v847, %v847
      %896 = vst [vmem:[%s293] sm:$0xf] %v848
      %897 = vst [vmem:[%s293 + $0x4] sm:$0xf] %v849
      %898 = vst [vmem:[%s293 + $0x8] sm:$0xf] %v850
      %899 = vst [vmem:[%s293 + $0xc] sm:$0xf] %v851
      %900 = vst [vmem:[%s293 + $0x10] sm:$0xf] %v852
      %901 = vst [vmem:[%s293 + $0x14] sm:$0xf] %v853
      %902 = vst [vmem:[%s293 + $0x18] sm:$0xf] %v854
      %903 = vst [vmem:[%s293 + $0x1c] sm:$0xf] %v855
      %904 = vst [vmem:[%s293 + $0x20] sm:$0xf] %v856
      %905 = vst [vmem:[%s293 + $0x24] sm:$0xf] %v857
      %906 = vst [vmem:[%s293 + $0x28] sm:$0xf] %v858
      %907 = vst [vmem:[%s293 + $0x2c] sm:$0xf] %v859
      %908 = vst [vmem:[%s293 + $0x30] sm:$0xf] %v860
      %909 = vst [vmem:[%s293 + $0x34] sm:$0xf] %v861
      %910 = vst [vmem:[%s293 + $0x38] sm:$0xf] %v862
      %911 = vst [vmem:[%s293 + $0x3c] sm:$0xf] %v863
      %912 = vst [vmem:[%s293 + $0x40] sm:$0xf] %v864
      %913 = vst [vmem:[%s293 + $0x44] sm:$0xf] %v865
      %914 = vst [vmem:[%s293 + $0x48] sm:$0xf] %v866
      %915 = vst [vmem:[%s293 + $0x4c] sm:$0xf] %v867
      %916 = vst [vmem:[%s293 + $0x50] sm:$0xf] %v868
      %917 = vst [vmem:[%s293 + $0x54] sm:$0xf] %v869
      %918 = vst [vmem:[%s293 + $0x58] sm:$0xf] %v870
      %919 = vst [vmem:[%s293 + $0x5c] sm:$0xf] %v871
      %s920 = smul.u32 24, %s21
      %p921 = scmp.lt.s32.totalorder %s20, 1
      %s922 = scalar_select %p921, %s20, 1
      %p923 = scmp.lt.s32.totalorder %s920, 47
      %s924 = scalar_select %p923, %s920, 47
      %p925 = scmp.lt.s32.totalorder %s22, 0
      %s926 = scalar_select %p925, %s22, 0
      %s927 = sadd.s32 %s926, %s924
      %s928 = smul.addr %s922, 48
      %s929 = sadd.s32 %s927, %s928
      %s930 = smul.addr %s929, 4
      %s931 = scalar_lea.vmem %s4, %s930
      // Predicated region
      $region37: #{conv_bn_silu.1} parent=35 // pred_check
        %p932 = pneg %p162
      $region38: #{conv_bn_silu.1} parent=35 // pred_check_branch
        %934 = sbr.rel (%p932) target = $region40
      $region39: #{conv_bn_silu.1} parent=35 // pred_region
        %s935 = smul.u32 24, %s21
      $region40: #{conv_bn_silu.1} parent=35 // pred_fallthru
        _
    $region36: #{conv_bn_silu.1} parent=5 // pred_fallthru
      _
    %p936 = scmp.le.s32.totalorder 2, %s10
    // Predicated region
    $region41: #{conv_bn_silu.1} parent=5 // pred_check
      %p937 = pneg %p936
    $region42: #{conv_bn_silu.1} parent=5 // pred_check_branch
      %939 = sbr.rel (%p937) target = $region44
    $region43: #{conv_bn_silu.1} parent=5 // pred_region
      %s940 = ssub.s32 %s10, 2
      // Predicated region
      $region45: #{conv_bn_silu.1} parent=43 // pred_check
        %p941 = pneg %p168
      $region46: #{conv_bn_silu.1} parent=43 // pred_check_branch
        %943 = sbr.rel (%p941) target = $region48
      $region47: #{conv_bn_silu.1} parent=43 // pred_region
        %s944 = smul.u32 24, %s24
        %p945 = scmp.lt.s32.totalorder %s23, 1
        %s946 = scalar_select %p945, %s23, 1
        %p947 = scmp.lt.s32.totalorder %s944, 47
        %s948 = scalar_select %p947, %s944, 47
        %p949 = scmp.lt.s32.totalorder %s25, 0
        %s950 = scalar_select %p949, %s25, 0
        %s951 = sadd.s32 %s950, %s948
        %s952 = smul.addr %s946, 48
        %s953 = sadd.s32 %s951, %s952
        %s954 = smul.addr %s953, 4
        %s955 = scalar_lea.vmem %s4, %s954
      $region48: #{conv_bn_silu.1} parent=43 // pred_fallthru
        _
    $region44: #{conv_bn_silu.1} parent=5 // pred_fallthru
      _
  $region6: #{conv_bn_silu.1} parent=0 // loop_footer
    %s14 = sadd.s32 1, %s10
  $region7: #{conv_bn_silu.1} parent=0 // loop_footer_branch
    %9 = sbr.rel target = $region3
  $region8: #{conv_bn_silu.1} parent=0 // loop_exit
    _

</llo_original>
